<compile_context>
chip_gen: v7x
topology: tpu7x:2x2x1
jax: 0.10.0
libtpu: 0.0.40
codegen_flags: <defaults>
</compile_context>

<pallas_src>
import functools

import jax
import jax.numpy as jnp
from jax.experimental import pallas as pl
from jax.experimental.pallas import tpu as pltpu

# Cityscapes class weights from the PyTorch module (use_weight=True -> C=19)
CLASS_WEIGHTS = (0.8373, 0.918, 0.866, 1.0345, 1.0166, 0.9969, 0.9754, 1.0489,
                 0.8786, 1.0023, 0.9539, 0.9843, 1.1116, 0.9037, 1.0865, 1.0955,
                 1.0865, 1.1529, 1.0507)

_TILE_P = 16384   # pixels per grid step in the fused pass (sweep 16384-65536)
_TILE_R = 2048    # rows of 128 pixels per grid step in the reduction pass
_NBINS = 32       # cumulative-count edges in [thresh, 1.0] for the OHEM kth


# ---------------------------------------------------------------------------
# Kernel 1 (fused, single streaming read of pred):
#   block layout: pred (1, C, TP)  -> channels on sublanes, pixels on lanes
#   emits per pixel: nll = -log_softmax(pred)[target], wy = weight[target]*valid
#   plus a per-tile (NB, 1) cumulative histogram of mask_prob (ignored -> 1.0)
# ---------------------------------------------------------------------------
def _fused_kernel(pred_ref, tgt_ref, w_ref, edges_ref,
                  nll_ref, wy_ref, hist_ref, *, ignore_index, hw, mask_tail):
    logits = pred_ref[0].astype(jnp.float32)           # (C, TP)
    tgt = tgt_ref[0]                                    # (1, TP) int32
    w = w_ref[...].astype(jnp.float32)                  # (C, 1) class weights
    edges = edges_ref[...]                              # (NB, 1) f32

    c, tp = logits.shape
    valid = tgt != ignore_index                         # (1, TP)
    tgt_c = jnp.where(valid, tgt, 0)

    cls = jax.lax.broadcasted_iota(jnp.int32, (c, tp), 0)   # channel ids
    onehot = (cls == tgt_c).astype(jnp.float32)         # (C, TP)

    m = jnp.max(logits, axis=0, keepdims=True)                          # (1,TP)
    sumexp = jnp.sum(jnp.exp(logits - m), axis=0, keepdims=True)
    lse = jnp.log(sumexp) + m
    logit_t = jnp.sum(logits * onehot, axis=0, keepdims=True)           # logit[y]

    nll = lse - logit_t                                  # -log_softmax[y]
    wy = jnp.sum(w * onehot, axis=0, keepdims=True) * valid.astype(jnp.float32)

    nll_ref[0] = nll
    wy_ref[0] = wy

    # mask_prob = softmax(pred)[y]; 1.0 for ignored pixels (like masked_fill_)
    mp = jnp.where(valid, jnp.minimum(jnp.exp(-nll), jnp.float32(1.0)),
                   jnp.float32(1.0))
    if mask_tail:
        # uneven last pixel tile: push out-of-bounds lanes above every edge
        pix = (pl.program_id(1) * tp
               + jax.lax.broadcasted_iota(jnp.int32, (1, tp), 1))
        mp = jnp.where(pix < hw, mp, jnp.float32(2.0))

    # cumulative counts  hist[b] = #{ mask_prob <= edges[b] }   (edges[0]=thresh)
    le = (mp <= edges).astype(jnp.float32)               # (NB, TP)
    hist_ref[0] = jnp.sum(le, axis=1, keepdims=True)     # (NB, 1)


def _fused_pass(pred3, tgt3, weight, edges, ignore_index, tile_p=_TILE_P):
    n, c, hw = pred3.shape
    # tile = full pixel dim if small, else a multiple of 128 (uneven tail OK)
    tp = hw if hw <= tile_p else tile_p
    gp = pl.cdiv(hw, tp)
    nb = edges.shape[0]
    w2 = weight.reshape(c, 1).astype(jnp.float32)
    e2 = edges.reshape(nb, 1).astype(jnp.float32)

    pix_sds = jax.ShapeDtypeStruct((n, 1, hw), jnp.float32)
    hist_sds = jax.ShapeDtypeStruct((n * gp, nb, 1), jnp.float32)
    pix_spec = pl.BlockSpec((1, 1, tp), lambda i, j: (i, 0, j))
    mask_tail = (hw % tp) != 0

    nll, wy, hist = pl.pallas_call(
        functools.partial(_fused_kernel, ignore_index=ignore_index, hw=hw,
                          mask_tail=mask_tail),
        out_shape=(pix_sds, pix_sds, hist_sds),
        grid=(n, gp),
        in_specs=[pl.BlockSpec((1, c, tp), lambda i, j: (i, 0, j)),
                  pix_spec,
                  pl.BlockSpec((c, 1), lambda i, j: (0, 0)),
                  pl.BlockSpec((nb, 1), lambda i, j: (0, 0))],
        out_specs=(pix_spec, pix_spec,
                   pl.BlockSpec((1, nb, 1), lambda i, j: (i * gp + j, 0, 0))),
        compiler_params=pltpu.CompilerParams(
            dimension_semantics=("parallel", "parallel"),
            vmem_limit_bytes=32 * 1024 * 1024),
    )(pred3, tgt3, w2, e2)
    return nll, wy, hist


# ---------------------------------------------------------------------------
# Kernel 2 (tiny, DMA-bound): kept-gated weighted sums -> lane-dense partials
#   kept = (exp(-nll) <= thr_eff); thr_eff = 2.0 disables OHEM (keep all)
#   ignored / padded pixels already have wy == 0, so no extra masks needed.
# ---------------------------------------------------------------------------
def _reduce_kernel(scal_ref, nll_ref, wy_ref, num_ref, den_ref):
    thr = scal_ref[0:1, 0:1]                     # (1,1) effective threshold
    nll = nll_ref[...]                           # (TR, 128)
    wy = wy_ref[...]
    keep = (jnp.exp(-nll) <= thr).astype(jnp.float32)   # EUP exp: free slot
    wk = wy * keep
    num_ref[...] = jnp.sum(wk * nll, axis=0, keepdims=True)
    den_ref[...] = jnp.sum(wk, axis=0, keepdims=True)


def _ohem_weighted_mean(nll_flat, wy_flat, thr_eff, tile_r=_TILE_R):
    p = nll_flat.shape[0]
    r = pl.cdiv(p, 128)
    tr = tile_r if r > tile_r else r
    r_pad = pl.cdiv(r, tr) * tr
    pp = r_pad * 128
    if pp != p:   # zero pads: wy == 0 there, so they contribute nothing
        nll_flat = jnp.pad(nll_flat, (0, pp - p))
        wy_flat = jnp.pad(wy_flat, (0, pp - p))
    g = r_pad // tr
    nll2 = nll_flat.reshape(r_pad, 128)
    wy2 = wy_flat.reshape(r_pad, 128)
    scal = jnp.zeros((1, 128), jnp.float32).at[0, 0].set(thr_eff)

    part_sds = jax.ShapeDtypeStruct((1, g * 128), jnp.float32)
    in_spec = pl.BlockSpec((tr, 128), lambda i: (i, 0))
    out_spec = pl.BlockSpec((1, 128), lambda i: (0, i))

    num, den = pl.pallas_call(
        _reduce_kernel,
        out_shape=(part_sds, part_sds),
        grid=(g,),
        in_specs=[pl.BlockSpec((1, 128), lambda i: (0, 0)),
                  in_spec, in_spec],
        out_specs=(out_spec, out_spec),
        compiler_params=pltpu.CompilerParams(
            dimension_semantics=("parallel",)),
    )(scal, nll2, wy2)
    return jnp.sum(num) / jnp.sum(den)


# ---------------------------------------------------------------------------
# OhemCrossEntropy2d (JAX / Pallas) -- mirrors the PyTorch forward, jit-able
# ---------------------------------------------------------------------------
class OhemCrossEntropy2d:
    def __init__(self, ignore_index=-1, thresh=0.7, min_kept=100000,
                 use_weight=True, **kwargs):
        self.ignore_index = int(ignore_index)
        self.thresh = float(thresh)
        self.min_kept = int(min_kept)
        self.use_weight = use_weight
        self.weight = (jnp.asarray(CLASS_WEIGHTS, dtype=jnp.float32)
                       if use_weight else None)

    def __call__(self, pred, target):
        n, c, h, w = pred.shape
        hw = h * w
        p_total = n * hw

        # free reshapes only -- no NCHW->NHWC transpose, no padding of logits
        pred3 = pred.reshape(n, c, hw)
        tgt3 = target.reshape(n, 1, hw).astype(jnp.int32)
        weight = (self.weight if self.weight is not None
                  else jnp.ones((c,), jnp.float32))

        # histogram edges: edges[0] == thresh exactly, edges[-1] == 1.0
        edges = (self.thresh + (1.0 - self.thresh)
                 * jnp.arange(_NBINS, dtype=jnp.float32) / (_NBINS - 1))

        # hot path (Pallas, single read of pred)
        nll, wy, hist = _fused_pass(pred3, tgt3, weight, edges,
                                    self.ignore_index)

        num_valid = jnp.sum((target.reshape(-1) != self.ignore_index)
                            .astype(jnp.int32))

        # diagnostic matching the PyTorch print (jit-safe, no host sync)
        jax.lax.cond(self.min_kept > num_valid,
                     lambda v: jax.debug.print("Lables: {}", v),
                     lambda v: None, num_valid)

        # OHEM threshold from the fused histogram (replaces top_k/argsort):
        # exact (== thresh) when the k-th smallest prob <= thresh, else the
        # containing bin's upper edge (at most (1-thresh)/(NB-1) too high).
        if self.min_kept > 0:
            k = min(p_total, self.min_kept)
            cum = jnp.sum(hist, axis=0).reshape(-1)          # (NB,) counts
            idx = jnp.argmax(cum >= jnp.float32(k))          # first bin with >= k
            threshold = edges[idx]
        else:
            threshold = jnp.float32(self.thresh)

        # PyTorch gating: `if min_kept > num_valid: print` (no OHEM)
        #                 `elif num_valid > 0: apply OHEM`
        do_ohem = jnp.logical_and(num_valid >= self.min_kept, num_valid > 0)
        thr_eff = jnp.where(do_ohem, threshold, jnp.float32(2.0))

        # small Pallas reduction over per-pixel vectors -> weighted mean loss
        return _ohem_weighted_mean(nll.reshape(-1), wy.reshape(-1), thr_eff)


# ---------------------------------------------------------------------------
# pure-JAX reference implementing the PyTorch forward exactly (eager only)
# ---------------------------------------------------------------------------
def _reference_loss(pred, target, *, ignore_index, thresh, min_kept, weight):
    n, c, h, w = pred.shape
    tgt = target.reshape(-1)
    valid = tgt != ignore_index
    tgt0 = jnp.where(valid, tgt, 0)
    num_valid = int(jnp.sum(valid))
    pix = jnp.arange(tgt.shape[0])

    prob = jax.nn.softmax(pred.astype(jnp.float32), axis=1)
    prob2 = jnp.transpose(prob, (1, 0, 2, 3)).reshape(c, -1)
    mask_prob = jnp.where(valid, prob2[tgt0, pix], 1.0)

    threshold = thresh
    kept = valid
    if min_kept > num_valid:
        pass
    elif num_valid > 0:
        if min_kept > 0:
            order = jnp.argsort(mask_prob)
            thr_idx = order[min(mask_prob.shape[0], min_kept) - 1]
            kth = float(mask_prob[thr_idx])
            if kth > thresh:
                threshold = kth
        kept = jnp.logical_and(valid, mask_prob <= threshold)

    logits2 = jnp.transpose(pred.astype(jnp.float32), (1, 0, 2, 3)).reshape(c, -1)
    lse = jax.scipy.special.logsumexp(logits2, axis=0)
    nll = lse - logits2[tgt0, pix]
    wk = weight[tgt0] * kept.astype(jnp.float32)
    return jnp.sum(wk * nll) / jnp.sum(wk)


if __name__ == "__main__":
    key = jax.random.PRNGKey(0)
    k_pred, k_tgt = jax.random.split(key)

    N, C, H, W = 2, 19, 16, 16   # C=19 matches the use_weight=True weights
    pred = jax.random.normal(k_pred, (N, C, H, W), dtype=jnp.float32)
    # targets in [-1, 18]; -1 is the ignore label
    target = jax.random.randint(k_tgt, (N, H, W), -1, C, dtype=jnp.int32)

    # min_kept=100 (< num valid pixels) so the OHEM keep-path is exercised
    loss_fn = OhemCrossEntropy2d(ignore_index=-1, thresh=0.7, min_kept=100,
                                 use_weight=True)

    # whole forward is traceable -> jit end to end
    loss = jax.jit(lambda pr, tg: loss_fn(pr, tg))(pred, target)
    jax.block_until_ready(loss)

    ref = _reference_loss(pred, target, ignore_index=-1, thresh=0.7,
                          min_kept=100,
                          weight=jnp.asarray(CLASS_WEIGHTS, jnp.float32))
    assert bool(jnp.isfinite(loss)), "loss is not finite"
    assert jnp.allclose(loss, ref, rtol=2e-4, atol=2e-5), (float(loss), float(ref))

    print("KERNEL_OK")
</pallas_src>

<mosaic_0001>
module attributes {stable_mosaic.version = 11 : i64} {
  func.func @_fused_kernel(%arg0: i32, %arg1: i32, %arg2: memref<1x19x256xf32, #tpu.memory_space<vmem>>, %arg3: memref<1x1x256xi32, #tpu.memory_space<vmem>>, %arg4: memref<19x1xf32, #tpu.memory_space<vmem>>, %arg5: memref<32x1xf32, #tpu.memory_space<vmem>>, %arg6: memref<1x1x256xf32, #tpu.memory_space<vmem>>, %arg7: memref<1x1x256xf32, #tpu.memory_space<vmem>>, %arg8: memref<1x32x1xf32, #tpu.memory_space<vmem>>) attributes {dimension_semantics = [#tpu.dimension_semantics<parallel>, #tpu.dimension_semantics<parallel>], iteration_bounds = array<i64: 2, 1>, scalar_prefetch = 0 : i64, scratch_operands = 0 : i64, tpu.core_type = #tpu.core_type<tc>, window_params = [{transform_indices = @transform_0, window_bounds = array<i64: 1, 19, 256>}, {transform_indices = @transform_1, window_bounds = array<i64: 1, 1, 256>}, {pipeline_mode = #tpu.pipeline_mode<synchronous>, transform_indices = @transform_2, window_bounds = array<i64: 19, 1>}, {pipeline_mode = #tpu.pipeline_mode<synchronous>, transform_indices = @transform_3, window_bounds = array<i64: 32, 1>}, {transform_indices = @transform_4, window_bounds = array<i64: 1, 1, 256>}, {transform_indices = @transform_5, window_bounds = array<i64: 1, 1, 256>}, {transform_indices = @transform_6, window_bounds = array<i64: 1, 32, 1>}]} {
    %c0 = arith.constant 0 : index
    %c0_0 = arith.constant 0 : index
    %c0_1 = arith.constant 0 : index
    %0 = vector.load %arg2[%c0, %c0_0, %c0_1] : memref<1x19x256xf32, #tpu.memory_space<vmem>>, vector<1x19x256xf32>
    %1 = vector.shape_cast %0 : vector<1x19x256xf32> to vector<19x256xf32>
    %c0_2 = arith.constant 0 : index
    %c0_3 = arith.constant 0 : index
    %c0_4 = arith.constant 0 : index
    %2 = vector.load %arg3[%c0_2, %c0_3, %c0_4] : memref<1x1x256xi32, #tpu.memory_space<vmem>>, vector<1x1x256xi32>
    %3 = vector.shape_cast %2 : vector<1x1x256xi32> to vector<1x256xi32>
    %c0_5 = arith.constant 0 : index
    %c0_6 = arith.constant 0 : index
    %4 = vector.load %arg4[%c0_5, %c0_6] : memref<19x1xf32, #tpu.memory_space<vmem>>, vector<19x1xf32>
    %c0_7 = arith.constant 0 : index
    %c0_8 = arith.constant 0 : index
    %5 = vector.load %arg5[%c0_7, %c0_8] : memref<32x1xf32, #tpu.memory_space<vmem>>, vector<32x1xf32>
    %c-1_i32 = arith.constant -1 : i32
    %6 = vector.broadcast %c-1_i32 : i32 to vector<1x256xi32>
    %7 = arith.cmpi ne, %3, %6 : vector<1x256xi32>
    %c0_i32 = arith.constant 0 : i32
    %8 = vector.broadcast %c0_i32 : i32 to vector<1x256xi32>
    %9 = arith.select %7, %3, %8 : vector<1x256xi1>, vector<1x256xi32>
    %10 = tpu.iota {dimensions = array<i32: 0>} : vector<19x256xi32>
    %11 = vector.broadcast %9 : vector<1x256xi32> to vector<19x256xi32>
    %12 = arith.cmpi eq, %10, %11 : vector<19x256xi32>
    %13 = arith.extui %12 : vector<19x256xi1> to vector<19x256xi32>
    %14 = arith.sitofp %13 : vector<19x256xi32> to vector<19x256xf32>
    %cst = arith.constant dense<0xFF800000> : vector<256xf32>
    %15 = vector.multi_reduction <maximumf>, %1, %cst [0] : vector<19x256xf32> to vector<256xf32>
    %16 = vector.shape_cast %15 : vector<256xf32> to vector<1x256xf32>
    %17 = vector.broadcast %16 : vector<1x256xf32> to vector<19x256xf32>
    %18 = arith.subf %1, %17 : vector<19x256xf32>
    %19 = math.exp %18 : vector<19x256xf32>
    %cst_9 = arith.constant dense<0.000000e+00> : vector<256xf32>
    %20 = vector.multi_reduction <add>, %19, %cst_9 [0] : vector<19x256xf32> to vector<256xf32>
    %21 = vector.shape_cast %20 : vector<256xf32> to vector<1x256xf32>
    %22 = math.log %21 : vector<1x256xf32>
    %23 = arith.addf %22, %16 : vector<1x256xf32>
    %24 = arith.mulf %1, %14 : vector<19x256xf32>
    %cst_10 = arith.constant dense<0.000000e+00> : vector<256xf32>
    %25 = vector.multi_reduction <add>, %24, %cst_10 [0] : vector<19x256xf32> to vector<256xf32>
    %26 = vector.shape_cast %25 : vector<256xf32> to vector<1x256xf32>
    %27 = arith.subf %23, %26 : vector<1x256xf32>
    %28 = vector.broadcast %4 : vector<19x1xf32> to vector<19x256xf32>
    %29 = arith.mulf %28, %14 : vector<19x256xf32>
    %cst_11 = arith.constant dense<0.000000e+00> : vector<256xf32>
    %30 = vector.multi_reduction <add>, %29, %cst_11 [0] : vector<19x256xf32> to vector<256xf32>
    %31 = vector.shape_cast %30 : vector<256xf32> to vector<1x256xf32>
    %32 = arith.extui %7 : vector<1x256xi1> to vector<1x256xi32>
    %33 = arith.sitofp %32 : vector<1x256xi32> to vector<1x256xf32>
    %34 = arith.mulf %31, %33 : vector<1x256xf32>
    %c0_12 = arith.constant 0 : index
    %c0_13 = arith.constant 0 : index
    %c0_14 = arith.constant 0 : index
    %35 = vector.load %arg6[%c0_12, %c0_13, %c0_14] : memref<1x1x256xf32, #tpu.memory_space<vmem>>, vector<1x1x256xf32>
    %36 = vector.shape_cast %35 : vector<1x1x256xf32> to vector<1x256xf32>
    %37 = vector.shape_cast %27 : vector<1x256xf32> to vector<1x1x256xf32>
    tpu.vector_store %arg6[%c0_12, %c0_13, %c0_14], %37 {strides = array<i32>} : memref<1x1x256xf32, #tpu.memory_space<vmem>>, vector<1x1x256xf32>,
    %c0_15 = arith.constant 0 : index
    %c0_16 = arith.constant 0 : index
    %c0_17 = arith.constant 0 : index
    %38 = vector.load %arg7[%c0_15, %c0_16, %c0_17] : memref<1x1x256xf32, #tpu.memory_space<vmem>>, vector<1x1x256xf32>
    %39 = vector.shape_cast %38 : vector<1x1x256xf32> to vector<1x256xf32>
    %40 = vector.shape_cast %34 : vector<1x256xf32> to vector<1x1x256xf32>
    tpu.vector_store %arg7[%c0_15, %c0_16, %c0_17], %40 {strides = array<i32>} : memref<1x1x256xf32, #tpu.memory_space<vmem>>, vector<1x1x256xf32>,
    %cst_18 = arith.constant 0.000000e+00 : f32
    %41 = vector.broadcast %cst_18 : f32 to vector<1x256xf32>
    %42 = arith.subf %41, %27 : vector<1x256xf32>
    %43 = math.exp %42 : vector<1x256xf32>
    %cst_19 = arith.constant 1.000000e+00 : f32
    %44 = vector.broadcast %cst_19 : f32 to vector<1x256xf32>
    %45 = arith.minimumf %43, %44 : vector<1x256xf32>
    %cst_20 = arith.constant 1.000000e+00 : f32
    %46 = vector.broadcast %cst_20 : f32 to vector<1x256xf32>
    %47 = arith.select %7, %45, %46 : vector<1x256xi1>, vector<1x256xf32>
    %48 = vector.broadcast %47 : vector<1x256xf32> to vector<32x256xf32>
    %49 = vector.broadcast %5 : vector<32x1xf32> to vector<32x256xf32>
    %50 = arith.cmpf ole, %48, %49 : vector<32x256xf32>
    %51 = arith.extui %50 : vector<32x256xi1> to vector<32x256xi32>
    %52 = arith.sitofp %51 : vector<32x256xi32> to vector<32x256xf32>
    %cst_21 = arith.constant dense<0.000000e+00> : vector<32xf32>
    %53 = vector.multi_reduction <add>, %52, %cst_21 [1] : vector<32x256xf32> to vector<32xf32>
    %54 = vector.shape_cast %53 : vector<32xf32> to vector<32x1xf32>
    %c0_22 = arith.constant 0 : index
    %c0_23 = arith.constant 0 : index
    %c0_24 = arith.constant 0 : index
    %55 = vector.load %arg8[%c0_22, %c0_23, %c0_24] : memref<1x32x1xf32, #tpu.memory_space<vmem>>, vector<1x32x1xf32>
    %56 = vector.shape_cast %55 : vector<1x32x1xf32> to vector<32x1xf32>
    %57 = vector.shape_cast %54 : vector<32x1xf32> to vector<1x32x1xf32>
    tpu.vector_store %arg8[%c0_22, %c0_23, %c0_24], %57 {strides = array<i32>} : memref<1x32x1xf32, #tpu.memory_space<vmem>>, vector<1x32x1xf32>,
    return
  }
  func.func @transform_0(%arg0: i32, %arg1: i32) -> (i32, i32, i32) {
    %c0_i32 = arith.constant 0 : i32
    %c0_i32_0 = arith.constant 0 : i32
    return %arg0, %c0_i32, %arg1 : i32, i32, i32
  }
  func.func @transform_1(%arg0: i32, %arg1: i32) -> (i32, i32, i32) {
    %c0_i32 = arith.constant 0 : i32
    %c0_i32_0 = arith.constant 0 : i32
    return %arg0, %c0_i32, %arg1 : i32, i32, i32
  }
  func.func @transform_2(%arg0: i32, %arg1: i32) -> (i32, i32) {
    %c0_i32 = arith.constant 0 : i32
    %c0_i32_0 = arith.constant 0 : i32
    %c0_i32_1 = arith.constant 0 : i32
    return %c0_i32, %c0_i32_0 : i32, i32
  }
  func.func @transform_3(%arg0: i32, %arg1: i32) -> (i32, i32) {
    %c0_i32 = arith.constant 0 : i32
    %c0_i32_0 = arith.constant 0 : i32
    %c0_i32_1 = arith.constant 0 : i32
    return %c0_i32, %c0_i32_0 : i32, i32
  }
  func.func @transform_4(%arg0: i32, %arg1: i32) -> (i32, i32, i32) {
    %c0_i32 = arith.constant 0 : i32
    %c0_i32_0 = arith.constant 0 : i32
    return %arg0, %c0_i32, %arg1 : i32, i32, i32
  }
  func.func @transform_5(%arg0: i32, %arg1: i32) -> (i32, i32, i32) {
    %c0_i32 = arith.constant 0 : i32
    %c0_i32_0 = arith.constant 0 : i32
    return %arg0, %c0_i32, %arg1 : i32, i32, i32
  }
  func.func @transform_6(%arg0: i32, %arg1: i32) -> (i32, i32, i32) {
    %c1_i32 = arith.constant 1 : i32
    %0 = arith.muli %arg0, %c1_i32 : i32
    %1 = arith.addi %0, %arg1 : i32
    %c0_i32 = arith.constant 0 : i32
    %c0_i32_0 = arith.constant 0 : i32
    %c0_i32_1 = arith.constant 0 : i32
    return %1, %c0_i32, %c0_i32_0 : i32, i32, i32
  }
}

module attributes {stable_mosaic.version = 11 : i64} {
  func.func @_reduce_kernel(%arg0: i32, %arg1: memref<1x128xf32, #tpu.memory_space<vmem>>, %arg2: memref<4x128xf32, #tpu.memory_space<vmem>>, %arg3: memref<4x128xf32, #tpu.memory_space<vmem>>, %arg4: memref<1x128xf32, #tpu.memory_space<vmem>>, %arg5: memref<1x128xf32, #tpu.memory_space<vmem>>) attributes {dimension_semantics = [#tpu.dimension_semantics<parallel>], iteration_bounds = array<i64: 1>, scalar_prefetch = 0 : i64, scratch_operands = 0 : i64, tpu.core_type = #tpu.core_type<tc>, window_params = [{pipeline_mode = #tpu.pipeline_mode<synchronous>, transform_indices = @transform_0, window_bounds = array<i64: 1, 128>}, {transform_indices = @transform_1, window_bounds = array<i64: 4, 128>}, {transform_indices = @transform_2, window_bounds = array<i64: 4, 128>}, {transform_indices = @transform_3, window_bounds = array<i64: 1, 128>}, {transform_indices = @transform_4, window_bounds = array<i64: 1, 128>}]} {
    %c0 = arith.constant 0 : index
    %c0_0 = arith.constant 0 : index
    %0 = vector.load %arg1[%c0, %c0_0] : memref<1x128xf32, #tpu.memory_space<vmem>>, vector<1x1xf32>
    %c0_1 = arith.constant 0 : index
    %c0_2 = arith.constant 0 : index
    %1 = vector.load %arg2[%c0_1, %c0_2] : memref<4x128xf32, #tpu.memory_space<vmem>>, vector<4x128xf32>
    %c0_3 = arith.constant 0 : index
    %c0_4 = arith.constant 0 : index
    %2 = vector.load %arg3[%c0_3, %c0_4] : memref<4x128xf32, #tpu.memory_space<vmem>>, vector<4x128xf32>
    %cst = arith.constant 0.000000e+00 : f32
    %3 = vector.broadcast %cst : f32 to vector<4x128xf32>
    %4 = arith.subf %3, %1 : vector<4x128xf32>
    %5 = math.exp %4 : vector<4x128xf32>
    %6 = vector.broadcast %0 : vector<1x1xf32> to vector<4x128xf32>
    %7 = arith.cmpf ole, %5, %6 : vector<4x128xf32>
    %8 = arith.extui %7 : vector<4x128xi1> to vector<4x128xi32>
    %9 = arith.sitofp %8 : vector<4x128xi32> to vector<4x128xf32>
    %10 = arith.mulf %2, %9 : vector<4x128xf32>
    %11 = arith.mulf %10, %1 : vector<4x128xf32>
    %cst_5 = arith.constant dense<0.000000e+00> : vector<128xf32>
    %12 = vector.multi_reduction <add>, %11, %cst_5 [0] : vector<4x128xf32> to vector<128xf32>
    %13 = vector.shape_cast %12 : vector<128xf32> to vector<1x128xf32>
    %c0_6 = arith.constant 0 : index
    %c0_7 = arith.constant 0 : index
    %14 = vector.load %arg4[%c0_6, %c0_7] : memref<1x128xf32, #tpu.memory_space<vmem>>, vector<1x128xf32>
    tpu.vector_store %arg4[%c0_6, %c0_7], %13 {strides = array<i32>} : memref<1x128xf32, #tpu.memory_space<vmem>>, vector<1x128xf32>,
    %cst_8 = arith.constant dense<0.000000e+00> : vector<128xf32>
    %15 = vector.multi_reduction <add>, %10, %cst_8 [0] : vector<4x128xf32> to vector<128xf32>
    %16 = vector.shape_cast %15 : vector<128xf32> to vector<1x128xf32>
    %c0_9 = arith.constant 0 : index
    %c0_10 = arith.constant 0 : index
    %17 = vector.load %arg5[%c0_9, %c0_10] : memref<1x128xf32, #tpu.memory_space<vmem>>, vector<1x128xf32>
    tpu.vector_store %arg5[%c0_9, %c0_10], %16 {strides = array<i32>} : memref<1x128xf32, #tpu.memory_space<vmem>>, vector<1x128xf32>,
    return
  }
  func.func @transform_0(%arg0: i32) -> (i32, i32) {
    %c0_i32 = arith.constant 0 : i32
    %c0_i32_0 = arith.constant 0 : i32
    %c0_i32_1 = arith.constant 0 : i32
    return %c0_i32, %c0_i32_0 : i32, i32
  }
  func.func @transform_1(%arg0: i32) -> (i32, i32) {
    %c0_i32 = arith.constant 0 : i32
    %c0_i32_0 = arith.constant 0 : i32
    return %arg0, %c0_i32 : i32, i32
  }
  func.func @transform_2(%arg0: i32) -> (i32, i32) {
    %c0_i32 = arith.constant 0 : i32
    %c0_i32_0 = arith.constant 0 : i32
    return %arg0, %c0_i32 : i32, i32
  }
  func.func @transform_3(%arg0: i32) -> (i32, i32) {
    %c0_i32 = arith.constant 0 : i32
    %c0_i32_0 = arith.constant 0 : i32
    return %c0_i32, %arg0 : i32, i32
  }
  func.func @transform_4(%arg0: i32) -> (i32, i32) {
    %c0_i32 = arith.constant 0 : i32
    %c0_i32_0 = arith.constant 0 : i32
    return %c0_i32, %arg0 : i32, i32
  }
}

</mosaic_0001>

<llo_original>
// kernel: _lambda_.3
$region0: #{_lambda_.3}
  #allocation0 [shape = 'u32[]', space=smem, size = 0x4, offset = 0x4, fixed_abs, tag = 'smem constant byte address 0x4 - core index']
  #allocation1 [shape = 'u32[144,128]{1,0:T(1,128)}', space=vmem, size = 0x12000, scoped, tag = 'internal scratch']
  %s0 = inlined_call_operand.vmem [shape: f32[1,128], index: 0, kind: input, shape index: {}]
  %s1 = inlined_call_operand.vmem [shape: f32[4,128], index: 1, kind: input, shape index: {}]
  %s2 = inlined_call_operand.vmem [shape: f32[4,128], index: 2, kind: input, shape index: {}]
  %s3 = inlined_call_operand.vmem [shape: f32[1,128], index: 3, kind: output, shape index: {0}]
  %s4 = inlined_call_operand.vmem [shape: f32[1,128], index: 4, kind: output, shape index: {1}]
  %5 = xla_tuple %s3, %s4
  %s6 = sld [smem:[#allocation0]]
  $region30: #{_lambda_.3} parent=0
    _
  %s8 = ssub.s32 1, %s6
  %s9 = scalar_select 0, %s8, %s6
  // Predicated region
  $region2: #{_lambda_.3} parent=0 // pred_check
    _
  $region3: #{_lambda_.3} parent=0 // pred_check_branch
    %11 = sbr.rel (0) target = $region5
  $region4: #{_lambda_.3} parent=0 // pred_region
    _
  $region5: #{_lambda_.3} parent=0 // pred_fallthru
    _
  // Predicated region
  $region6: #{_lambda_.3} parent=0 // pred_check
    _
  $region7: #{_lambda_.3} parent=0 // pred_check_branch
    %13 = sbr.rel (0) target = $region9
  $region8: #{_lambda_.3} parent=0 // pred_region
    _
  $region9: #{_lambda_.3} parent=0 // pred_fallthru
    _
  // Predicated region
  $region10: #{_lambda_.3} parent=0 // pred_check
    _
  $region11: #{_lambda_.3} parent=0 // pred_check_branch
    %15 = sbr.rel (0) target = $region13
  $region12: #{_lambda_.3} parent=0 // pred_region
    _
  $region13: #{_lambda_.3} parent=0 // pred_fallthru
    _
  %v16 = vld [vmem:[%s0] sm:$0x1]
  %v17 = vld [vmem:[%s1] sm:$0xf]
  %v18 = vld [vmem:[%s2] sm:$0xf]
  %v19 = vsub.f32 0.0, %v17
  %v20 = vmul.f32 %v19, 1.442695
  %v21 = vpow.pop %v20
  %v23 = vlaneseq
  %v24 = vshrl.u32 %v23, 7
  %v25 = vsub.s32 0, %v24
  %v26 = vrot.slane %v16, %v25
  %27 = vset.pattern.permute.xlu0 0
  %28 = vperm.xlu0 %27, %v26
  %v29 = vpop.permute.xlu0 %28
  %vm31 = vcmp.le.f32.partialorder %v21, %v29
  %v32 = vsel %vm31, 1, 0
  %v33 = vcvt.s32.f32 %v32
  %v34 = vmul.f32 %v18, %v33
  %v35 = vmul.f32 %v34, %v17
  %vm36 = vcmask 1043456
  %v37 = vsel %vm36, %v35, 0.0
  %v38 = vrot.slane %v37, 4
  %v39 = vadd.f32 %v37, %v38
  %v40 = vrot.slane %v39, 2
  %v41 = vadd.f32 %v39, %v40
  %v42 = vrot.slane %v41, 1
  %v43 = vadd.f32 %v41, %v42
  %44 = vst [vmem:[%s3] sm:$0x1] %v43
  %v45 = vsel %vm36, %v34, 0.0
  %v46 = vrot.slane %v45, 4
  %v47 = vadd.f32 %v45, %v46
  %v48 = vrot.slane %v47, 2
  %v49 = vadd.f32 %v47, %v48
  %v50 = vrot.slane %v49, 1
  %v51 = vadd.f32 %v49, %v50
  %52 = vst [vmem:[%s4] sm:$0x1] %v51
  // Predicated region
  $region14: #{_lambda_.3} parent=0 // pred_check
    _
  $region15: #{_lambda_.3} parent=0 // pred_check_branch
    %54 = sbr.rel (0) target = $region17
  $region16: #{_lambda_.3} parent=0 // pred_region
    _
  $region17: #{_lambda_.3} parent=0 // pred_fallthru
    _
  // Predicated region
  $region18: #{_lambda_.3} parent=0 // pred_check
    _
  $region19: #{_lambda_.3} parent=0 // pred_check_branch
    %56 = sbr.rel (0) target = $region21
  $region20: #{_lambda_.3} parent=0 // pred_region
    _
  $region21: #{_lambda_.3} parent=0 // pred_fallthru
    _
  // Predicated region
  $region22: #{_lambda_.3} parent=0 // pred_check
    _
  $region23: #{_lambda_.3} parent=0 // pred_check_branch
    %58 = sbr.rel (0) target = $region25
  $region24: #{_lambda_.3} parent=0 // pred_region
    _
  $region25: #{_lambda_.3} parent=0 // pred_fallthru
    _
  // Predicated region
  $region26: #{_lambda_.3} parent=0 // pred_check
    _
  $region27: #{_lambda_.3} parent=0 // pred_check_branch
    %60 = sbr.rel (0) target = $region29
  $region28: #{_lambda_.3} parent=0 // pred_region
    _
  $region29: #{_lambda_.3} parent=0 // pred_fallthru
    _

// kernel: _lambda_.2
$region0: #{_lambda_.2}
  #allocation0 [shape = 'u32[]', space=smem, size = 0x4, offset = 0x4, fixed_abs, tag = 'smem constant byte address 0x4 - core index']
  #allocation1 [shape = 'u32[144,128]{1,0:T(1,128)}', space=vmem, size = 0x12000, scoped, tag = 'internal scratch']
  %s0 = inlined_call_operand.vmem [shape: f32[2,19,256], index: 0, kind: input, shape index: {}]
  %s1 = inlined_call_operand.vmem [shape: s32[2,1,256], index: 1, kind: input, shape index: {}]
  %s2 = inlined_call_operand.vmem [shape: f32[19,1], index: 2, kind: input, shape index: {}]
  %s3 = inlined_call_operand.vmem [shape: f32[32,1], index: 3, kind: input, shape index: {}]
  %s4 = inlined_call_operand.vmem [shape: f32[2,1,256], index: 4, kind: output, shape index: {0}]
  %s5 = inlined_call_operand.vmem [shape: f32[2,1,256], index: 5, kind: output, shape index: {1}]
  %s6 = inlined_call_operand.vmem [shape: f32[2,32,1], index: 6, kind: output, shape index: {2}]
  %7 = xla_tuple %s4, %s5, %s6
  %s8 = sld [smem:[#allocation0]]
  $region65: #{_lambda_.2} parent=0
    _
  %s10 = ssub.s32 1, %s8
  %s11 = scalar_select 0, %s10, %s8
  loop: start=0, step=1, limit=4
  $region2: #{_lambda_.2} parent=0 // loop_pre_header
    _
  $region3: #{_lambda_.2} parent=0 // loop_header
    %s13 = sphi 0, %s17
    %p14 = scmp.ge.s32.totalorder %s13, 4
    %s20 = sphi 0, %s32
    %s21 = sphi 0, %s28
    %s22 = sphi 0, %s20
    %s23 = sphi 0, %s21
    %s24 = sphi 0, %s22
    %s25 = sphi 0, %s23
    %s37 = sphi 0, %s39
    %s40 = sphi 0, %s37
    %s41 = sphi 0, %s40
    %s57 = sphi 0, %s41
    %s65 = sphi 0, %s67
    %s68 = sphi 0, %s65
    %s69 = sphi 0, %s68
    %s85 = sphi 0, %s69
    %s89 = sphi 0, %s89
    %s91 = sphi 0, %s89
    %s92 = sphi 0, %s91
    %s106 = sphi 0, %s92
    %s110 = sphi 0, %s110
    %s112 = sphi 0, %s110
    %s113 = sphi 0, %s112
    %s127 = sphi 0, %s113
    %s135 = sphi 0, %s137
    %s138 = sphi 0, %s135
    %s139 = sphi 0, %s138
    %s155 = sphi 0, %s139
    %s163 = sphi 0, %s165
    %s166 = sphi 0, %s163
    %s167 = sphi 0, %s166
    %s183 = sphi 0, %s167
    %s191 = sphi 0, %s193
    %s194 = sphi 0, %s191
    %s195 = sphi 0, %s194
    %s211 = sphi 0, %s195
  $region4: #{_lambda_.2} parent=0 // loop_header_branch
    %16 = sbr.rel (%p14) target = $region8
  $region5: #{_lambda_.2} parent=0 // loop_body
    %s18 = ssub.s32 %s13, 1
    %s19 = ssub.s32 %s13, 2
    %s26 = sadd.s32 1, %s21
    %p27 = scmp.ge.s32.totalorder %s26, 1
    %s28 = scalar_select %p27, 0, %s26
    %s29 = sadd.s32 1, %s20
    %s30 = scalar_select %p27, %s29, %s20
    %p31 = scmp.ge.s32.totalorder %s30, 2
    %s32 = scalar_select %p31, 0, %s30
    %s33 = ssub.s32 %s20, %s32
    %s34 = ssub.s32 %s21, %s28
    %s35 = sor.u32 %s33, %s34
    %p36 = scmp.eq.s32.totalorder %s35, 0
    %s38 = sadd.s32 %s37, 1
    %s39 = scalar_select %p36, %s37, %s38
    %p42 = pneg %p36
    %p43 = scmp.eq.s32.totalorder %s13, 1
    %p44 = por %p42, %p43
    %p45 = scmp.ne.s32.totalorder %s37, %s40
    %p46 = scmp.eq.s32.totalorder %s13, 0
    %p47 = por %p45, %p46
    %p48 = scmp.ne.s32.totalorder %s37, %s40
    %p49 = scmp.eq.s32.totalorder %s18, 1
    %p50 = por %p48, %p49
    %p51 = scmp.ne.s32.totalorder %s40, %s41
    %p52 = scmp.eq.s32.totalorder %s18, 0
    %p53 = por %p51, %p52
    %p54 = scmp.ne.s32.totalorder %s40, %s41
    %p55 = scmp.eq.s32.totalorder %s19, 1
    %p56 = por %p54, %p55
    %p58 = scmp.ne.s32.totalorder %s41, %s57
    %p59 = scmp.eq.s32.totalorder %s19, 0
    %p60 = por %p58, %p59
    %s61 = ssub.s32 %s20, %s32
    %s62 = ssub.s32 %s21, %s28
    %s63 = sor.u32 %s61, %s62
    %p64 = scmp.eq.s32.totalorder %s63, 0
    %s66 = sadd.s32 %s65, 1
    %s67 = scalar_select %p64, %s65, %s66
    %p70 = pneg %p64
    %p71 = scmp.eq.s32.totalorder %s13, 1
    %p72 = por %p70, %p71
    %p73 = scmp.ne.s32.totalorder %s65, %s68
    %p74 = scmp.eq.s32.totalorder %s13, 0
    %p75 = por %p73, %p74
    %p76 = scmp.ne.s32.totalorder %s65, %s68
    %p77 = scmp.eq.s32.totalorder %s18, 1
    %p78 = por %p76, %p77
    %p79 = scmp.ne.s32.totalorder %s68, %s69
    %p80 = scmp.eq.s32.totalorder %s18, 0
    %p81 = por %p79, %p80
    %p82 = scmp.ne.s32.totalorder %s68, %s69
    %p83 = scmp.eq.s32.totalorder %s19, 1
    %p84 = por %p82, %p83
    %p86 = scmp.ne.s32.totalorder %s69, %s85
    %p87 = scmp.eq.s32.totalorder %s19, 0
    %p88 = por %p86, %p87
    %s90 = sadd.s32 %s89, 1
    %p93 = scmp.eq.s32.totalorder %s13, 1
    %p94 = scmp.ne.s32.totalorder %s89, %s91
    %p95 = scmp.eq.s32.totalorder %s13, 0
    %p96 = por %p94, %p95
    %p97 = scmp.ne.s32.totalorder %s89, %s91
    %p98 = scmp.eq.s32.totalorder %s18, 1
    %p99 = por %p97, %p98
    %p100 = scmp.ne.s32.totalorder %s91, %s92
    %p101 = scmp.eq.s32.totalorder %s18, 0
    %p102 = por %p100, %p101
    %p103 = scmp.ne.s32.totalorder %s91, %s92
    %p104 = scmp.eq.s32.totalorder %s19, 1
    %p105 = por %p103, %p104
    %p107 = scmp.ne.s32.totalorder %s92, %s106
    %p108 = scmp.eq.s32.totalorder %s19, 0
    %p109 = por %p107, %p108
    %s111 = sadd.s32 %s110, 1
    %p114 = scmp.eq.s32.totalorder %s13, 1
    %p115 = scmp.ne.s32.totalorder %s110, %s112
    %p116 = scmp.eq.s32.totalorder %s13, 0
    %p117 = por %p115, %p116
    %p118 = scmp.ne.s32.totalorder %s110, %s112
    %p119 = scmp.eq.s32.totalorder %s18, 1
    %p120 = por %p118, %p119
    %p121 = scmp.ne.s32.totalorder %s112, %s113
    %p122 = scmp.eq.s32.totalorder %s18, 0
    %p123 = por %p121, %p122
    %p124 = scmp.ne.s32.totalorder %s112, %s113
    %p125 = scmp.eq.s32.totalorder %s19, 1
    %p126 = por %p124, %p125
    %p128 = scmp.ne.s32.totalorder %s113, %s127
    %p129 = scmp.eq.s32.totalorder %s19, 0
    %p130 = por %p128, %p129
    %s131 = ssub.s32 %s20, %s32
    %s132 = ssub.s32 %s21, %s28
    %s133 = sor.u32 %s131, %s132
    %p134 = scmp.eq.s32.totalorder %s133, 0
    %s136 = sadd.s32 %s135, 1
    %s137 = scalar_select %p134, %s135, %s136
    %p140 = pneg %p134
    %p141 = scmp.eq.s32.totalorder %s13, 1
    %p142 = por %p140, %p141
    %p143 = scmp.ne.s32.totalorder %s135, %s138
    %p144 = scmp.eq.s32.totalorder %s13, 0
    %p145 = por %p143, %p144
    %p146 = scmp.ne.s32.totalorder %s135, %s138
    %p147 = scmp.eq.s32.totalorder %s18, 1
    %p148 = por %p146, %p147
    %p149 = scmp.ne.s32.totalorder %s138, %s139
    %p150 = scmp.eq.s32.totalorder %s18, 0
    %p151 = por %p149, %p150
    %p152 = scmp.ne.s32.totalorder %s138, %s139
    %p153 = scmp.eq.s32.totalorder %s19, 1
    %p154 = por %p152, %p153
    %p156 = scmp.ne.s32.totalorder %s139, %s155
    %p157 = scmp.eq.s32.totalorder %s19, 0
    %p158 = por %p156, %p157
    %s159 = ssub.s32 %s20, %s32
    %s160 = ssub.s32 %s21, %s28
    %s161 = sor.u32 %s159, %s160
    %p162 = scmp.eq.s32.totalorder %s161, 0
    %s164 = sadd.s32 %s163, 1
    %s165 = scalar_select %p162, %s163, %s164
    %p168 = pneg %p162
    %p169 = scmp.eq.s32.totalorder %s13, 1
    %p170 = por %p168, %p169
    %p171 = scmp.ne.s32.totalorder %s163, %s166
    %p172 = scmp.eq.s32.totalorder %s13, 0
    %p173 = por %p171, %p172
    %p174 = scmp.ne.s32.totalorder %s163, %s166
    %p175 = scmp.eq.s32.totalorder %s18, 1
    %p176 = por %p174, %p175
    %p177 = scmp.ne.s32.totalorder %s166, %s167
    %p178 = scmp.eq.s32.totalorder %s18, 0
    %p179 = por %p177, %p178
    %p180 = scmp.ne.s32.totalorder %s166, %s167
    %p181 = scmp.eq.s32.totalorder %s19, 1
    %p182 = por %p180, %p181
    %p184 = scmp.ne.s32.totalorder %s167, %s183
    %p185 = scmp.eq.s32.totalorder %s19, 0
    %p186 = por %p184, %p185
    %s187 = sadd.s32 %s20, %s21
    %s188 = sadd.s32 %s32, %s28
    %s189 = ssub.s32 %s187, %s188
    %p190 = scmp.eq.s32.totalorder %s189, 0
    %s192 = sadd.s32 %s191, 1
    %s193 = scalar_select %p190, %s191, %s192
    %p196 = pneg %p190
    %p197 = scmp.eq.s32.totalorder %s13, 1
    %p198 = por %p196, %p197
    %p199 = scmp.ne.s32.totalorder %s191, %s194
    %p200 = scmp.eq.s32.totalorder %s13, 0
    %p201 = por %p199, %p200
    %p202 = scmp.ne.s32.totalorder %s191, %s194
    %p203 = scmp.eq.s32.totalorder %s18, 1
    %p204 = por %p202, %p203
    %p205 = scmp.ne.s32.totalorder %s194, %s195
    %p206 = scmp.eq.s32.totalorder %s18, 0
    %p207 = por %p205, %p206
    %p208 = scmp.ne.s32.totalorder %s194, %s195
    %p209 = scmp.eq.s32.totalorder %s19, 1
    %p210 = por %p208, %p209
    %p212 = scmp.ne.s32.totalorder %s195, %s211
    %p213 = scmp.eq.s32.totalorder %s19, 0
    %p214 = por %p212, %p213
    %p215 = scmp.le.s32.totalorder 1, %s13
    %p216 = scmp.lt.s32.totalorder %s13, 3
    %p217 = pnand %p215, %p216
    %p218 = pneg %p217
    // Predicated region
    $region9: #{_lambda_.2} parent=5 // pred_check
      _
    $region10: #{_lambda_.2} parent=5 // pred_check_branch
      %220 = sbr.rel (%p217) target = $region12
    $region11: #{_lambda_.2} parent=5 // pred_region
      %s221 = ssub.s32 %s13, 1
      // Predicated region
      $region13: #{_lambda_.2} parent=11 // pred_check
        %p222 = pneg %p102
      $region14: #{_lambda_.2} parent=11 // pred_check_branch
        %224 = sbr.rel (%p222) target = $region16
      $region15: #{_lambda_.2} parent=11 // pred_region
        _
      $region16: #{_lambda_.2} parent=11 // pred_fallthru
        _
      // Predicated region
      $region17: #{_lambda_.2} parent=11 // pred_check
        %p225 = pneg %p123
      $region18: #{_lambda_.2} parent=11 // pred_check_branch
        %227 = sbr.rel (%p225) target = $region20
      $region19: #{_lambda_.2} parent=11 // pred_region
        _
      $region20: #{_lambda_.2} parent=11 // pred_fallthru
        _
    $region12: #{_lambda_.2} parent=5 // pred_fallthru
      _
    %p228 = scmp.lt.s32.totalorder %s13, 2
    // Predicated region
    $region21: #{_lambda_.2} parent=5 // pred_check
      %p229 = pneg %p228
    $region22: #{_lambda_.2} parent=5 // pred_check_branch
      %231 = sbr.rel (%p229) target = $region24
    $region23: #{_lambda_.2} parent=5 // pred_region
      // Predicated region
      $region25: #{_lambda_.2} parent=23 // pred_check
        %p232 = pneg %p47
      $region26: #{_lambda_.2} parent=23 // pred_check_branch
        %234 = sbr.rel (%p232) target = $region28
      $region27: #{_lambda_.2} parent=23 // pred_region
        %s235 = smul.u32 2, %s21
        %p236 = scmp.lt.s32.totalorder %s20, 1
        %s237 = scalar_select %p236, %s20, 1
        %p238 = scmp.lt.s32.totalorder %s235, 1
        %s239 = scalar_select %p238, %s235, 1
        %s240 = smul.addr %s237, 6
        %s241 = sadd.s32 %s239, %s240
        %s242 = smul.addr %s241, 8
        %s243 = scalar_lea.vmem %s0, %s242
        %s244 = smul.u32 2, %s21
      $region28: #{_lambda_.2} parent=23 // pred_fallthru
        _
      // Predicated region
      $region29: #{_lambda_.2} parent=23 // pred_check
        %p245 = pneg %p75
      $region30: #{_lambda_.2} parent=23 // pred_check_branch
        %247 = sbr.rel (%p245) target = $region32
      $region31: #{_lambda_.2} parent=23 // pred_region
        %s248 = smul.u32 2, %s21
        %p249 = scmp.lt.s32.totalorder %s20, 1
        %s250 = scalar_select %p249, %s20, 1
        %p251 = scmp.lt.s32.totalorder %s248, 1
        %s252 = scalar_select %p251, %s248, 1
        %s253 = smul.addr %s250, 2
        %s254 = sadd.s32 %s252, %s253
        %s255 = scalar_lea.vmem %s1, %s254
        %s256 = smul.u32 2, %s21
      $region32: #{_lambda_.2} parent=23 // pred_fallthru
        _
    $region24: #{_lambda_.2} parent=5 // pred_fallthru
      _
    %p257 = scmp.le.s32.totalorder 1, %s13
    %p258 = scmp.lt.s32.totalorder %s13, 3
    %p259 = pnand %p257, %p258
    %p260 = pneg %p259
    // Predicated region
    $region33: #{_lambda_.2} parent=5 // pred_check
      _
    $region34: #{_lambda_.2} parent=5 // pred_check_branch
      %262 = sbr.rel (%p259) target = $region36
    $region35: #{_lambda_.2} parent=5 // pred_region
      %s263 = ssub.s32 %s13, 1
      %s264 = smul.u32 2, %s23
      %p265 = scmp.lt.s32.totalorder %s22, 1
      %s266 = scalar_select %p265, %s22, 1
      %p267 = scmp.lt.s32.totalorder %s264, 1
      %s268 = scalar_select %p267, %s264, 1
      %s269 = smul.addr %s266, 6
      %s270 = sadd.s32 %s268, %s269
      %s271 = smul.addr %s270, 8
      %s272 = scalar_lea.vmem %s0, %s271
      %p273 = pneg %p53
      %p274 = pneg %p50
      %s275 = smul.u32 2, %s23
      %p276 = scmp.lt.s32.totalorder %s22, 1
      %s277 = scalar_select %p276, %s22, 1
      %p278 = scmp.lt.s32.totalorder %s275, 1
      %s279 = scalar_select %p278, %s275, 1
      %s280 = smul.addr %s277, 2
      %s281 = sadd.s32 %s279, %s280
      %s282 = scalar_lea.vmem %s1, %s281
      %p283 = pneg %p81
      %p284 = pneg %p78
      %p285 = pneg %p102
      %p286 = pneg %p99
      %p287 = pneg %p123
      %p288 = pneg %p120
      %p289 = pneg %p151
      %p290 = pneg %p148
      %s291 = smul.u32 2, %s23
      %p292 = scmp.lt.s32.totalorder %s22, 1
      %s293 = scalar_select %p292, %s22, 1
      %p294 = scmp.lt.s32.totalorder %s291, 1
      %s295 = scalar_select %p294, %s291, 1
      %s296 = smul.addr %s293, 2
      %s297 = sadd.s32 %s295, %s296
      %s298 = scalar_lea.vmem %s4, %s297
      %p299 = pneg %p179
      %p300 = pneg %p176
      %s301 = smul.u32 2, %s23
      %p302 = scmp.lt.s32.totalorder %s22, 1
      %s303 = scalar_select %p302, %s22, 1
      %p304 = scmp.lt.s32.totalorder %s301, 1
      %s305 = scalar_select %p304, %s301, 1
      %s306 = smul.addr %s303, 2
      %s307 = sadd.s32 %s305, %s306
      %s308 = scalar_lea.vmem %s5, %s307
      %p309 = pneg %p207
      %p310 = pneg %p204
      %s311 = sadd.s32 %s22, %s23
      %p312 = scmp.lt.s32.totalorder %s311, 1
      %s313 = scalar_select %p312, %s311, 1
      %s314 = smul.addr %s313, 4
      %s315 = smul.addr %s314, 8
      %s316 = scalar_lea.vmem %s6, %s315
      %s317 = smul.u32 2, %s23
      %p318 = scmp.lt.s32.totalorder %s22, 1
      %s319 = scalar_select %p318, %s22, 1
      %p320 = scmp.lt.s32.totalorder %s317, 1
      %s321 = scalar_select %p320, %s317, 1
      %s322 = smul.addr %s319, 6
      %s323 = sadd.s32 %s321, %s322
      %s324 = smul.addr %s323, 8
      %s325 = scalar_lea.vmem %s0, %s324
      %s326 = smul.u32 2, %s23
      %s327 = smul.u32 2, %s23
      %p328 = scmp.lt.s32.totalorder %s22, 1
      %s329 = scalar_select %p328, %s22, 1
      %p330 = scmp.lt.s32.totalorder %s327, 1
      %s331 = scalar_select %p330, %s327, 1
      %s332 = smul.addr %s329, 2
      %s333 = sadd.s32 %s331, %s332
      %s334 = scalar_lea.vmem %s1, %s333
      %s335 = smul.u32 2, %s23
      %s336 = smul.u32 2, %s23
      %p337 = scmp.lt.s32.totalorder %s22, 1
      %s338 = scalar_select %p337, %s22, 1
      %p339 = scmp.lt.s32.totalorder %s336, 1
      %s340 = scalar_select %p339, %s336, 1
      %s341 = smul.addr %s338, 2
      %s342 = sadd.s32 %s340, %s341
      %s343 = scalar_lea.vmem %s4, %s342
      %s344 = smul.u32 2, %s23
      %s345 = smul.u32 2, %s23
      %p346 = scmp.lt.s32.totalorder %s22, 1
      %s347 = scalar_select %p346, %s22, 1
      %p348 = scmp.lt.s32.totalorder %s345, 1
      %s349 = scalar_select %p348, %s345, 1
      %s350 = smul.addr %s347, 2
      %s351 = sadd.s32 %s349, %s350
      %s352 = scalar_lea.vmem %s5, %s351
      %s353 = smul.u32 2, %s23
      %s354 = sadd.s32 %s22, %s23
      %p355 = scmp.lt.s32.totalorder %s354, 1
      %s356 = scalar_select %p355, %s354, 1
      %s357 = smul.addr %s356, 4
      %s358 = smul.addr %s357, 8
      %s359 = scalar_lea.vmem %s6, %s358
      %s360 = sadd.s32 %s22, %s23
      %v361 = vld [vmem:[%s325] sm:$0xff]
      %v362 = vld [vmem:[%s325 + $0x8] sm:$0xff]
      %v363 = vld [vmem:[%s325 + $0x10] sm:$0xff]
      %v364 = vld [vmem:[%s325 + $0x18] sm:$0xff]
      %v365 = vld [vmem:[%s325 + $0x20] sm:$0x7]
      %v366 = vld [vmem:[%s325 + $0x28] sm:$0x7]
      %v367 = vld [vmem:[%s334] sm:$0x3]
      %v368 = vld [vmem:[%s2] sm:$0xff]
      %v369 = vld [vmem:[%s2 + $0x8] sm:$0xff]
      %v370 = vld [vmem:[%s2 + $0x10] sm:$0x7]
      %v371 = vld [vmem:[%s3] sm:$0xff]
      %v372 = vld [vmem:[%s3 + $0x8] sm:$0xff]
      %v373 = vld [vmem:[%s3 + $0x10] sm:$0xff]
      %v374 = vld [vmem:[%s3 + $0x18] sm:$0xff]
      %vm375 = vcmp.ne.s32.totalorder %v367, 4294967295
      %v376 = vsel %vm375, %v367, 0
      %v377 = vlaneseq
      %v378 = vshrl.u32 %v377, 7
      %v379 = vadd.s32 %v378, 8
      %v380 = vadd.s32 %v378, 16
      %v381 = vlaneseq
      %v382 = vshrl.u32 %v381, 7
      %v383 = vsub.s32 0, %v382
      %v384 = vrot.slane %v376, %v383
      %v385 = vlaneseq
      %v386 = vshrl.u32 %v385, 7
      %v387 = vsub.s32 1, %v386
      %v388 = vrot.slane %v376, %v387
      %vm389 = vcmp.eq.s32.totalorder %v378, %v384
      %vm390 = vcmp.eq.s32.totalorder %v378, %v388
      %vm391 = vcmp.eq.s32.totalorder %v379, %v384
      %vm392 = vcmp.eq.s32.totalorder %v379, %v388
      %vm393 = vcmp.eq.s32.totalorder %v380, %v384
      %vm394 = vcmp.eq.s32.totalorder %v380, %v388
      %v395 = vsel %vm389, 1, 0
      %v396 = vsel %vm390, 1, 0
      %v397 = vsel %vm391, 1, 0
      %v398 = vsel %vm392, 1, 0
      %v399 = vsel %vm393, 1, 0
      %v400 = vsel %vm394, 1, 0
      %v401 = vcvt.s32.f32 %v395
      %v402 = vcvt.s32.f32 %v396
      %v403 = vcvt.s32.f32 %v397
      %v404 = vcvt.s32.f32 %v398
      %v405 = vcvt.s32.f32 %v399
      %v406 = vcvt.s32.f32 %v400
      %vm407 = vcmask 1042432
      %v408 = vsel %vm407, %v365, -inf
      %v409 = vmax.f32 %v361, %v408
      %v410 = vmax.f32 %v409, %v363
      %v411 = vrot.slane %v410, 4
      %v412 = vmax.f32 %v410, %v411
      %v413 = vrot.slane %v412, 2
      %v414 = vmax.f32 %v412, %v413
      %v415 = vrot.slane %v414, 1
      %v416 = vmax.f32 %v414, %v415
      %v417 = vsel %vm407, %v366, -inf
      %v418 = vmax.f32 %v362, %v417
      %v419 = vmax.f32 %v418, %v364
      %v420 = vrot.slane %v419, 4
      %v421 = vmax.f32 %v419, %v420
      %v422 = vrot.slane %v421, 2
      %v423 = vmax.f32 %v421, %v422
      %v424 = vrot.slane %v423, 1
      %v425 = vmax.f32 %v423, %v424
      %v426 = vsub.f32 %v361, %v416
      %v427 = vsub.f32 %v362, %v425
      %v428 = vsub.f32 %v363, %v416
      %v429 = vsub.f32 %v364, %v425
      %v430 = vsub.f32 %v365, %v416
      %v431 = vsub.f32 %v366, %v425
      %v432 = vmul.f32 %v426, 1.442695
      %v433 = vpow.pop %v432
      %v434 = vmul.f32 %v427, 1.442695
      %v435 = vpow.pop %v434
      %v436 = vmul.f32 %v428, 1.442695
      %v437 = vpow.pop %v436
      %v438 = vmul.f32 %v429, 1.442695
      %v439 = vpow.pop %v438
      %v440 = vmul.f32 %v430, 1.442695
      %v441 = vpow.pop %v440
      %v442 = vmul.f32 %v431, 1.442695
      %v443 = vpow.pop %v442
      %v444 = vadd.f32 %v433, %v437
      %v445 = vsel %vm407, %v441, 0.0
      %v446 = vadd.f32 %v444, %v445
      %v447 = vrot.slane %v446, 4
      %v448 = vadd.f32 %v446, %v447
      %v449 = vrot.slane %v448, 2
      %v450 = vadd.f32 %v448, %v449
      %v451 = vrot.slane %v450, 1
      %v452 = vadd.f32 %v450, %v451
      %v453 = vadd.f32 %v435, %v439
      %v454 = vsel %vm407, %v443, 0.0
      %v455 = vadd.f32 %v453, %v454
      %v456 = vrot.slane %v455, 4
      %v457 = vadd.f32 %v455, %v456
      %v458 = vrot.slane %v457, 2
      %v459 = vadd.f32 %v457, %v458
      %v460 = vrot.slane %v459, 1
      %v461 = vadd.f32 %v459, %v460
      %v462 = vlog2.pop %v452
      %v463 = vmul.f32 %v462, 0.6931472
      %v464 = vlog2.pop %v461
      %v465 = vmul.f32 %v464, 0.6931472
      %v466 = vadd.f32 %v463, %v416
      %v467 = vadd.f32 %v465, %v425
      %v468 = vmul.f32 %v361, %v401
      %v469 = vmul.f32 %v362, %v402
      %v470 = vmul.f32 %v363, %v403
      %v471 = vmul.f32 %v364, %v404
      %v472 = vmul.f32 %v365, %v405
      %v473 = vmul.f32 %v366, %v406
      %v474 = vadd.f32 %v468, %v470
      %v475 = vsel %vm407, %v472, 0.0
      %v476 = vadd.f32 %v474, %v475
      %v477 = vrot.slane %v476, 4
      %v478 = vadd.f32 %v476, %v477
      %v479 = vrot.slane %v478, 2
      %v480 = vadd.f32 %v478, %v479
      %v481 = vrot.slane %v480, 1
      %v482 = vadd.f32 %v480, %v481
      %v483 = vadd.f32 %v469, %v471
      %v484 = vsel %vm407, %v473, 0.0
      %v485 = vadd.f32 %v483, %v484
      %v486 = vrot.slane %v485, 4
      %v487 = vadd.f32 %v485, %v486
      %v488 = vrot.slane %v487, 2
      %v489 = vadd.f32 %v487, %v488
      %v490 = vrot.slane %v489, 1
      %v491 = vadd.f32 %v489, %v490
      %v492 = vsub.f32 %v466, %v482
      %v493 = vsub.f32 %v467, %v491
      %495 = vset.pattern.permute.xlu0 0
      %496 = vperm.xlu0 %495, %v368
      %v497 = vpop.permute.xlu0 %496
      %500 = vset.pattern.permute.xlu0 0
      %501 = vperm.xlu0 %500, %v369
      %v502 = vpop.permute.xlu0 %501
      %505 = vset.pattern.permute.xlu0 0
      %506 = vperm.xlu0 %505, %v370
      %v507 = vpop.permute.xlu0 %506
      %v509 = vmul.f32 %v497, %v401
      %v510 = vmul.f32 %v497, %v402
      %v511 = vmul.f32 %v502, %v403
      %v512 = vmul.f32 %v502, %v404
      %v513 = vmul.f32 %v507, %v405
      %v514 = vmul.f32 %v507, %v406
      %v515 = vadd.f32 %v509, %v511
      %v516 = vsel %vm407, %v513, 0.0
      %v517 = vadd.f32 %v515, %v516
      %v518 = vrot.slane %v517, 4
      %v519 = vadd.f32 %v517, %v518
      %v520 = vrot.slane %v519, 2
      %v521 = vadd.f32 %v519, %v520
      %v522 = vrot.slane %v521, 1
      %v523 = vadd.f32 %v521, %v522
      %v524 = vadd.f32 %v510, %v512
      %v525 = vsel %vm407, %v514, 0.0
      %v526 = vadd.f32 %v524, %v525
      %v527 = vrot.slane %v526, 4
      %v528 = vadd.f32 %v526, %v527
      %v529 = vrot.slane %v528, 2
      %v530 = vadd.f32 %v528, %v529
      %v531 = vrot.slane %v530, 1
      %v532 = vadd.f32 %v530, %v531
      %v533 = vsel %vm375, 1, 0
      %v534 = vcvt.s32.f32 %v533
      %v536 = vlaneseq
      %v537 = vshrl.u32 %v536, 7
      %v538 = vsub.s32 0, %v537
      %v539 = vrot.slane %v534, %v538
      %v540 = vlaneseq
      %v541 = vshrl.u32 %v540, 7
      %v542 = vsub.s32 1, %v541
      %v543 = vrot.slane %v534, %v542
      %v546 = vmul.f32 %v523, %v539
      %v547 = vmul.f32 %v532, %v543
      %v550 = vcombine.low %v492, %v493
      %v552 = vunpack.c.l.s4 1966171168
      %v553 = vunpack.c.0.s8 %v552
      %v554 = vlaneseq
      %v555 = vshrl.u32 %v554, 7
      %v556 = vsub.s32 %v553, %v555
      %v557 = vrot.slane %v550, %v556
      %v559 = vunpack.c.l.s4 1966171168
      %v560 = vunpack.c.0.s8 %v559
      %v561 = vlaneseq
      %v562 = vshrl.u32 %v561, 7
      %v563 = vsub.s32 %v560, %v562
      %v564 = vrot.slane %v557, %v563
      %v566 = vlaneseq
      %vm567 = vcmp.ge.s32.totalorder %v566, 0
      %vm568 = vcmp.lt.s32.totalorder %v566, 256
      %vm569 = vmand %vm567, %vm568
      %570 = vst.msk [vmem:[%s343] sm:$0x3] %vm569, %v564
      %v573 = vcombine.low %v546, %v547
      %v575 = vunpack.c.l.s4 1966171168
      %v576 = vunpack.c.0.s8 %v575
      %v577 = vlaneseq
      %v578 = vshrl.u32 %v577, 7
      %v579 = vsub.s32 %v576, %v578
      %v580 = vrot.slane %v573, %v579
      %v582 = vunpack.c.l.s4 1966171168
      %v583 = vunpack.c.0.s8 %v582
      %v584 = vlaneseq
      %v585 = vshrl.u32 %v584, 7
      %v586 = vsub.s32 %v583, %v585
      %v587 = vrot.slane %v580, %v586
      %589 = vst.msk [vmem:[%s352] sm:$0x3] %vm569, %v587
      %v590 = vsub.f32 0.0, %v492
      %v591 = vsub.f32 0.0, %v493
      %v592 = vmul.f32 %v590, 1.442695
      %v593 = vpow.pop %v592
      %v594 = vmul.f32 %v591, 1.442695
      %v595 = vpow.pop %v594
      %v596 = vmin.f32 %v593, 1.0
      %v597 = vmin.f32 %v595, 1.0
      %v600 = vcombine.low %v596, %v597
      %v602 = vunpack.c.l.s4 1966171168
      %v603 = vunpack.c.0.s8 %v602
      %v604 = vlaneseq
      %v605 = vshrl.u32 %v604, 7
      %v606 = vsub.s32 %v603, %v605
      %v607 = vrot.slane %v600, %v606
      %v609 = vunpack.c.l.s4 1966171168
      %v610 = vunpack.c.0.s8 %v609
      %v611 = vlaneseq
      %v612 = vshrl.u32 %v611, 7
      %v613 = vsub.s32 %v610, %v612
      %v614 = vrot.slane %v607, %v613
      %v616 = vsel %vm375, %v614, 1.0
      %v618 = vlaneseq
      %v619 = vshrl.u32 %v618, 7
      %v620 = vsub.s32 0, %v619
      %v621 = vrot.slane %v616, %v620
      %v622 = vlaneseq
      %v623 = vshrl.u32 %v622, 7
      %v624 = vsub.s32 1, %v623
      %v625 = vrot.slane %v616, %v624
      %629 = vset.pattern.permute.xlu0 0
      %630 = vperm.xlu0 %629, %v371
      %v631 = vpop.permute.xlu0 %630
      %634 = vset.pattern.permute.xlu0 0
      %635 = vperm.xlu0 %634, %v372
      %v636 = vpop.permute.xlu0 %635
      %639 = vset.pattern.permute.xlu0 0
      %640 = vperm.xlu0 %639, %v373
      %v641 = vpop.permute.xlu0 %640
      %644 = vset.pattern.permute.xlu0 0
      %645 = vperm.xlu0 %644, %v374
      %v646 = vpop.permute.xlu0 %645
      %vm648 = vcmp.le.f32.partialorder %v621, %v631
      %vm649 = vcmp.le.f32.partialorder %v625, %v631
      %vm650 = vcmp.le.f32.partialorder %v621, %v636
      %vm651 = vcmp.le.f32.partialorder %v625, %v636
      %vm652 = vcmp.le.f32.partialorder %v621, %v641
      %vm653 = vcmp.le.f32.partialorder %v625, %v641
      %vm654 = vcmp.le.f32.partialorder %v621, %v646
      %vm655 = vcmp.le.f32.partialorder %v625, %v646
      %v656 = vsel %vm648, 1, 0
      %v657 = vsel %vm649, 1, 0
      %v658 = vsel %vm650, 1, 0
      %v659 = vsel %vm651, 1, 0
      %v660 = vsel %vm652, 1, 0
      %v661 = vsel %vm653, 1, 0
      %v662 = vsel %vm654, 1, 0
      %v663 = vsel %vm655, 1, 0
      %v664 = vcvt.s32.f32 %v656
      %v665 = vcvt.s32.f32 %v657
      %v666 = vcvt.s32.f32 %v658
      %v667 = vcvt.s32.f32 %v659
      %v668 = vcvt.s32.f32 %v660
      %v669 = vcvt.s32.f32 %v661
      %v670 = vcvt.s32.f32 %v662
      %v671 = vcvt.s32.f32 %v663
      %v672 = vadd.f32 %v664, %v665
      %673 = vadd.xlane.f32.xlu0 %v672
      %v674 = vpop.xlane.xlu0 %673
      %v675 = vadd.f32 %v666, %v667
      %676 = vadd.xlane.f32.xlu0 %v675
      %v677 = vpop.xlane.xlu0 %676
      %v678 = vadd.f32 %v668, %v669
      %679 = vadd.xlane.f32.xlu0 %v678
      %v680 = vpop.xlane.xlu0 %679
      %v681 = vadd.f32 %v670, %v671
      %682 = vadd.xlane.f32.xlu0 %v681
      %v683 = vpop.xlane.xlu0 %682
      %vm684 = vcmask 7168
      %685 = vst.msk [vmem:[%s359] sm:$0xff] %vm684, %v674
      %686 = vst.msk [vmem:[%s359 + $0x8] sm:$0xff] %vm684, %v677
      %687 = vst.msk [vmem:[%s359 + $0x10] sm:$0xff] %vm684, %v680
      %688 = vst.msk [vmem:[%s359 + $0x18] sm:$0xff] %vm684, %v683
      %s689 = smul.u32 2, %s23
      %p690 = scmp.lt.s32.totalorder %s22, 1
      %s691 = scalar_select %p690, %s22, 1
      %p692 = scmp.lt.s32.totalorder %s689, 1
      %s693 = scalar_select %p692, %s689, 1
      %s694 = smul.addr %s691, 2
      %s695 = sadd.s32 %s693, %s694
      %s696 = scalar_lea.vmem %s4, %s695
      %s697 = smul.u32 2, %s23
      %p698 = scmp.lt.s32.totalorder %s22, 1
      %s699 = scalar_select %p698, %s22, 1
      %p700 = scmp.lt.s32.totalorder %s697, 1
      %s701 = scalar_select %p700, %s697, 1
      %s702 = smul.addr %s699, 2
      %s703 = sadd.s32 %s701, %s702
      %s704 = scalar_lea.vmem %s5, %s703
      %s705 = sadd.s32 %s22, %s23
      %p706 = scmp.lt.s32.totalorder %s705, 1
      %s707 = scalar_select %p706, %s705, 1
      %s708 = smul.addr %s707, 4
      %s709 = smul.addr %s708, 8
      %s710 = scalar_lea.vmem %s6, %s709
      // Predicated region
      $region37: #{_lambda_.2} parent=35 // pred_check
        %p711 = pneg %p148
      $region38: #{_lambda_.2} parent=35 // pred_check_branch
        %713 = sbr.rel (%p711) target = $region40
      $region39: #{_lambda_.2} parent=35 // pred_region
        %s714 = smul.u32 2, %s23
      $region40: #{_lambda_.2} parent=35 // pred_fallthru
        _
      // Predicated region
      $region41: #{_lambda_.2} parent=35 // pred_check
        %p715 = pneg %p176
      $region42: #{_lambda_.2} parent=35 // pred_check_branch
        %717 = sbr.rel (%p715) target = $region44
      $region43: #{_lambda_.2} parent=35 // pred_region
        %s718 = smul.u32 2, %s23
      $region44: #{_lambda_.2} parent=35 // pred_fallthru
        _
      // Predicated region
      $region45: #{_lambda_.2} parent=35 // pred_check
        %p719 = pneg %p204
      $region46: #{_lambda_.2} parent=35 // pred_check_branch
        %721 = sbr.rel (%p719) target = $region48
      $region47: #{_lambda_.2} parent=35 // pred_region
        %s722 = sadd.s32 %s22, %s23
      $region48: #{_lambda_.2} parent=35 // pred_fallthru
        _
    $region36: #{_lambda_.2} parent=5 // pred_fallthru
      _
    %p723 = scmp.le.s32.totalorder 2, %s13
    // Predicated region
    $region49: #{_lambda_.2} parent=5 // pred_check
      %p724 = pneg %p723
    $region50: #{_lambda_.2} parent=5 // pred_check_branch
      %726 = sbr.rel (%p724) target = $region52
    $region51: #{_lambda_.2} parent=5 // pred_region
      %s727 = ssub.s32 %s13, 2
      // Predicated region
      $region53: #{_lambda_.2} parent=51 // pred_check
        %p728 = pneg %p154
      $region54: #{_lambda_.2} parent=51 // pred_check_branch
        %730 = sbr.rel (%p728) target = $region56
      $region55: #{_lambda_.2} parent=51 // pred_region
        %s731 = smul.u32 2, %s25
        %p732 = scmp.lt.s32.totalorder %s24, 1
        %s733 = scalar_select %p732, %s24, 1
        %p734 = scmp.lt.s32.totalorder %s731, 1
        %s735 = scalar_select %p734, %s731, 1
        %s736 = smul.addr %s733, 2
        %s737 = sadd.s32 %s735, %s736
        %s738 = scalar_lea.vmem %s4, %s737
      $region56: #{_lambda_.2} parent=51 // pred_fallthru
        _
      // Predicated region
      $region57: #{_lambda_.2} parent=51 // pred_check
        %p739 = pneg %p182
      $region58: #{_lambda_.2} parent=51 // pred_check_branch
        %741 = sbr.rel (%p739) target = $region60
      $region59: #{_lambda_.2} parent=51 // pred_region
        %s742 = smul.u32 2, %s25
        %p743 = scmp.lt.s32.totalorder %s24, 1
        %s744 = scalar_select %p743, %s24, 1
        %p745 = scmp.lt.s32.totalorder %s742, 1
        %s746 = scalar_select %p745, %s742, 1
        %s747 = smul.addr %s744, 2
        %s748 = sadd.s32 %s746, %s747
        %s749 = scalar_lea.vmem %s5, %s748
      $region60: #{_lambda_.2} parent=51 // pred_fallthru
        _
      // Predicated region
      $region61: #{_lambda_.2} parent=51 // pred_check
        %p750 = pneg %p210
      $region62: #{_lambda_.2} parent=51 // pred_check_branch
        %752 = sbr.rel (%p750) target = $region64
      $region63: #{_lambda_.2} parent=51 // pred_region
        %s753 = sadd.s32 %s24, %s25
        %p754 = scmp.lt.s32.totalorder %s753, 1
        %s755 = scalar_select %p754, %s753, 1
        %s756 = smul.addr %s755, 4
        %s757 = smul.addr %s756, 8
        %s758 = scalar_lea.vmem %s6, %s757
      $region64: #{_lambda_.2} parent=51 // pred_fallthru
        _
    $region52: #{_lambda_.2} parent=5 // pred_fallthru
      _
  $region6: #{_lambda_.2} parent=0 // loop_footer
    %s17 = sadd.s32 1, %s13
  $region7: #{_lambda_.2} parent=0 // loop_footer_branch
    %12 = sbr.rel target = $region3
  $region8: #{_lambda_.2} parent=0 // loop_exit
    _

</llo_original>
